<compile_context>
chip_gen: v5e
topology: v5e:2x2
jax: 0.10.0
libtpu: 0.0.40
codegen_flags: <defaults>
</compile_context>

<pallas_src>
import functools

import jax
import jax.numpy as jnp
from jax.experimental import pallas as pl
from jax.experimental.pallas import tpu as pltpu

NEG_SLOPE = 0.2      # LeakyReLU negative_slope
MASK_VAL = -1e30     # "no edge" logit


def _round_up(x, m):
    return (x + m - 1) // m * m


def _vmem_budget_bytes():
    """Generation-aware VMEM budget (v7x has 64 MiB/TC, v4/v5/v6 have 128 MiB)."""
    kind = ""
    try:
        kind = jax.devices()[0].device_kind.lower()
    except Exception:
        pass
    if any(t in kind for t in ("v4", "v5", "v6")):
        return 100 * 1024 * 1024
    return 44 * 1024 * 1024   # v7x / unknown: stay well under 64 MiB


def _pick_tm(n_pad, d, need_attn, budget):
    """Largest dst-tile TM (multiple of 128 dividing n_pad) fitting the budget."""
    per_row = n_pad * (2 * 4                       # edge-code block, double-buffered
                       + 4 * 4                     # live f32 (TM, N) temporaries
                       + (2 * 2 if need_attn else 0))  # bf16 attn out, double-buffered
    fixed = 2 * n_pad * d * 2 + 4 * n_pad * 4 + (1 << 20)  # ft (bf16) + el/er + slack
    for tm in (2048, 1024, 512, 256, 128):
        if tm <= n_pad and n_pad % tm == 0 and tm * per_row + fixed <= budget:
            return tm
    return min(n_pad, 128)


# ---------------------------------------------------------------------------
# Per (dst-tile, head) kernel body
#   ee[i,j] = ee_tab[code[i,j], h]   (code == T  ->  -1e30 "no edge")
#   e       = leaky_relu(el[j] + er[i] + ee[i,j])
#   a       = softmax over src axis (edge_softmax), bf16
#   rst     = a @ ft   (bf16 operands, f32 accumulation)
# ---------------------------------------------------------------------------
def _gat_tile_compute(tab_ref, el_ref, er_ref, ft_ref, code_ref):
    h = pl.program_id(1)
    num_types = tab_ref.shape[0]                   # static T

    code = code_ref[...]                           # (TM, N) int32
    # Non-edge mask folded into the type select: start from the mask value.
    ee = jnp.full(code.shape, MASK_VAL, dtype=jnp.float32)
    for t in range(num_types):                     # T is tiny -> unrolled VPU selects
        ee = jnp.where(code == t, tab_ref[t, h], ee)

    e = el_ref[...] + er_ref[...] + ee             # (1,N) + (TM,1) + (TM,N)
    e = jnp.where(e > 0, e, NEG_SLOPE * e)         # LeakyReLU(0.2)
    # leaky_relu(-1e30 + el + er) ~ -2e29 still underflows in exp below
    # (invariant: |el + er| << 1e30, guaranteed for normal-scale features).

    m = jnp.max(e, axis=-1, keepdims=True)
    p = jnp.exp(e - m)
    s = jnp.sum(p, axis=-1, keepdims=True)
    a = (p * pl.reciprocal(s, approx=True)).astype(jnp.bfloat16)

    rst = jnp.dot(a, ft_ref[...], preferred_element_type=jnp.float32)   # (TM, D)
    return a, rst


def _gat_kernel_attn(tab_ref, el_ref, er_ref, ft_ref, code_ref, a_ref, rst_ref):
    a, rst = _gat_tile_compute(tab_ref, el_ref, er_ref, ft_ref, code_ref)
    a_ref[...] = a
    rst_ref[...] = rst


def _gat_kernel_noattn(tab_ref, el_ref, er_ref, ft_ref, code_ref, rst_ref):
    _, rst = _gat_tile_compute(tab_ref, el_ref, er_ref, ft_ref, code_ref)
    rst_ref[...] = rst


def gat_fused(ee_tab, el, er, ft, edge_code, need_attn):
    H, n_pad, d = ft.shape
    budget = _vmem_budget_bytes()
    tm = _pick_tm(n_pad, d, need_attn, budget)
    grid = (n_pad // tm, H)     # dst-tile axis first: megacore split + code reuse

    in_specs = [
        pl.BlockSpec(memory_space=pltpu.MemorySpace.SMEM),           # (T, H) table
        pl.BlockSpec((None, 1, n_pad), lambda m, h: (h, 0, 0)),      # el  (1, N)
        pl.BlockSpec((None, tm, 1), lambda m, h: (h, m, 0)),         # er  (TM, 1)
        pl.BlockSpec((None, n_pad, d), lambda m, h: (h, 0, 0)),      # ft  (N, D) bf16
        pl.BlockSpec((tm, n_pad), lambda m, h: (m, 0)),              # edge codes
    ]

    rst_shape = jax.ShapeDtypeStruct((H, n_pad, d), jnp.float32)
    rst_spec = pl.BlockSpec((None, tm, d), lambda m, h: (h, m, 0))
    if need_attn:
        kernel = _gat_kernel_attn
        # bf16 attention dump: halves the largest HBM write (already consumed
        # at bf16 precision inside the kernel).
        out_shape = (jax.ShapeDtypeStruct((H, n_pad, n_pad), jnp.bfloat16),
                     rst_shape)
        out_specs = (pl.BlockSpec((None, tm, n_pad), lambda m, h: (h, m, 0)),
                     rst_spec)
    else:
        kernel = _gat_kernel_noattn
        out_shape = rst_shape
        out_specs = rst_spec

    return pl.pallas_call(
        kernel,
        out_shape=out_shape,
        grid=grid,
        in_specs=in_specs,
        out_specs=out_specs,
        compiler_params=pltpu.CompilerParams(
            dimension_semantics=("parallel", "parallel"),
            vmem_limit_bytes=budget),
    )(ee_tab, el, er, ft, edge_code)


# ---------------------------------------------------------------------------
# Full forward (lane-dense fc + tiny glue in XLA, attention in the kernel)
# ---------------------------------------------------------------------------
@functools.partial(jax.jit, static_argnames=("need_attn",))
def changed_gat_conv_forward(params, feat, adj_mask, etype_mat, need_attn=True):
    H = params["attn_l"].shape[1]
    D = params["attn_l"].shape[2]
    EF = params["attn_e"].shape[2]
    T = params["edge_emb"].shape[0]
    N, _ = feat.shape
    n_pad = max(_round_up(N, 128), 128)
    pad = n_pad - N

    # fc for all heads at once: (N, F_in) @ (F_in, H*D), bf16 operands, f32 acc.
    w_flat = jnp.transpose(params["fc_w"])                              # (F_in, H*D)
    ft_flat = jnp.dot(jnp.pad(feat, ((0, pad), (0, 0))).astype(jnp.bfloat16),
                      w_flat.astype(jnp.bfloat16),
                      preferred_element_type=jnp.float32)               # (n_pad, H*D)
    ft_nhd = ft_flat.reshape(n_pad, H, D)

    # Per-node attention logit pieces, kept in f32 (tiny tensors).
    el = jnp.sum(ft_nhd * params["attn_l"], axis=-1)                    # (n_pad, H)
    er = jnp.sum(ft_nhd * params["attn_r"], axis=-1)                    # (n_pad, H)
    el_in = jnp.transpose(el)[:, None, :]                               # (H, 1, n_pad)
    er_in = jnp.transpose(er)[:, :, None]                               # (H, n_pad, 1)
    ft_h = jnp.transpose(ft_nhd, (1, 0, 2)).astype(jnp.bfloat16)        # (H, n_pad, D)

    # Per-edge-TYPE attention term (T is tiny): embedding -> fc_e -> *attn_e, sum.
    e_proj = (params["edge_emb"] @ params["fc_e_w"].T).reshape(T, H, EF)
    ee_tab = jnp.sum(e_proj * params["attn_e"], axis=-1).astype(jnp.float32)  # (T, H)

    # Single int32 code map: edge type for real edges, T (reserved) = "no edge".
    edge_code = jnp.where(adj_mask > 0, etype_mat, T).astype(jnp.int32)
    edge_code = jnp.pad(edge_code, ((0, pad), (0, pad)), constant_values=T)

    outs = gat_fused(ee_tab, el_in, er_in, ft_h, edge_code, need_attn)
    if need_attn:
        a_full, rst_full = outs
        a = a_full[:, :N, :N]          # bf16 attention (res_attn path)
    else:
        a, rst_full = None, outs

    rst = jnp.transpose(rst_full, (1, 0, 2))[:N]                        # (N, H, D)
    # TODO(synk): residual / bias / activation / dropout / res_attn blending are
    # disabled in the default module config and therefore not implemented here.
    return rst, a


# ---------------------------------------------------------------------------
# Deterministic parameter init (xavier-normal-like, gain=sqrt(2))
# ---------------------------------------------------------------------------
def init_params(key, in_feats, out_feats, num_heads, edge_feats, num_etypes):
    ks = jax.random.split(key, 6)
    gain = 2.0 ** 0.5

    def xavier(k, shape, fan_in, fan_out):
        std = gain * (2.0 / (fan_in + fan_out)) ** 0.5
        return (std * jax.random.normal(k, shape)).astype(jnp.float32)

    return {
        "fc_w": xavier(ks[0], (num_heads * out_feats, in_feats),
                       in_feats, num_heads * out_feats),
        "fc_e_w": xavier(ks[1], (num_heads * edge_feats, edge_feats),
                         edge_feats, num_heads * edge_feats),
        "attn_l": xavier(ks[2], (1, num_heads, out_feats), out_feats, num_heads),
        "attn_r": xavier(ks[3], (1, num_heads, out_feats), out_feats, num_heads),
        "attn_e": xavier(ks[4], (1, num_heads, edge_feats), edge_feats, num_heads),
        "edge_emb": jax.random.normal(ks[5], (num_etypes, edge_feats),
                                      dtype=jnp.float32),
    }


# ---------------------------------------------------------------------------
# Pure-JAX reference (same dense-graph math) for a sanity check
# ---------------------------------------------------------------------------
def reference_forward(params, feat, adj, etype_mat):
    H = params["attn_l"].shape[1]
    D = params["attn_l"].shape[2]
    ef = params["attn_e"].shape[2]
    N = feat.shape[0]
    ft = (feat @ params["fc_w"].T).reshape(N, H, D)
    el = jnp.sum(ft * params["attn_l"], axis=-1)                     # (N, H)
    er = jnp.sum(ft * params["attn_r"], axis=-1)
    e_proj = (params["edge_emb"] @ params["fc_e_w"].T).reshape(-1, H, ef)
    ee_t = jnp.sum(e_proj * params["attn_e"], axis=-1)               # (T, H)
    ee = ee_t[etype_mat]                                             # (dst, src, H)
    e = el[None, :, :] + er[:, None, :] + ee
    e = jnp.where(e > 0, e, NEG_SLOPE * e)
    e = jnp.where(adj[:, :, None] > 0, e, -1e30)
    e = e - jnp.max(e, axis=1, keepdims=True)
    p = jnp.exp(e) * adj[:, :, None]
    a = p / jnp.sum(p, axis=1, keepdims=True)
    rst = jnp.einsum("ijh,jhd->ihd", a, ft)
    return rst, jnp.transpose(a, (2, 0, 1))


if __name__ == "__main__":
    N, F_in, H, D = 64, 32, 4, 32          # nodes, in_feats, num_heads, out_feats
    EF, T = 16, 4                          # edge_feats, num_etypes

    key = jax.random.PRNGKey(0)
    kp, kf, ka, ke = jax.random.split(key, 4)
    params = init_params(kp, F_in, D, H, EF, T)

    feat = jax.random.normal(kf, (N, F_in), dtype=jnp.float32)
    adj = (jax.random.uniform(ka, (N, N)) < 0.15).astype(jnp.float32)
    adj = jnp.maximum(adj, jnp.eye(N, dtype=jnp.float32))  # self-loops: no 0-in-degree
    etype_mat = jax.random.randint(ke, (N, N), 0, T, dtype=jnp.int32)

    # Full path (returns the dense attention like the PyTorch module does).
    rst, a = changed_gat_conv_forward(params, feat, adj, etype_mat, need_attn=True)
    jax.block_until_ready((rst, a))

    # Fast path: skip the (H, N, N) attention write when res_attn is unused.
    rst_fast, _ = changed_gat_conv_forward(params, feat, adj, etype_mat,
                                           need_attn=False)
    jax.block_until_ready(rst_fast)

    rst_ref, a_ref = reference_forward(params, feat, adj, etype_mat)
    assert jnp.allclose(rst, rst_ref, atol=5e-2, rtol=5e-2)
    assert jnp.allclose(rst_fast, rst_ref, atol=5e-2, rtol=5e-2)
    assert jnp.allclose(a.astype(jnp.float32), a_ref, atol=5e-2, rtol=5e-2)

    print("KERNEL_OK")
</pallas_src>

<mosaic_0001>
module attributes {stable_mosaic.version = 11 : i64} {
  func.func @_gat_kernel_attn(%arg0: i32, %arg1: i32, %arg2: memref<4x4xf32, #tpu.memory_space<smem>>, %arg3: memref<1x1x128xf32, #tpu.memory_space<vmem>>, %arg4: memref<1x128x1xf32, #tpu.memory_space<vmem>>, %arg5: memref<1x128x32xbf16, #tpu.memory_space<vmem>>, %arg6: memref<128x128xi32, #tpu.memory_space<vmem>>, %arg7: memref<1x128x128xbf16, #tpu.memory_space<vmem>>, %arg8: memref<1x128x32xf32, #tpu.memory_space<vmem>>) attributes {dimension_semantics = [#tpu.dimension_semantics<parallel>, #tpu.dimension_semantics<parallel>], iteration_bounds = array<i64: 1, 4>, scalar_prefetch = 0 : i64, scratch_operands = 0 : i64, tpu.core_type = #tpu.core_type<tc>, window_params = [{transform_indices = @transform_0, window_bounds = array<i64: 4, 4>}, {transform_indices = @transform_1, window_bounds = array<i64: 1, 1, 128>}, {transform_indices = @transform_2, window_bounds = array<i64: 1, 128, 1>}, {transform_indices = @transform_3, window_bounds = array<i64: 1, 128, 32>}, {transform_indices = @transform_4, window_bounds = array<i64: 128, 128>}, {transform_indices = @transform_5, window_bounds = array<i64: 1, 128, 128>}, {transform_indices = @transform_6, window_bounds = array<i64: 1, 128, 32>}]} {
    %c0 = arith.constant 0 : index
    %c0_0 = arith.constant 0 : index
    %0 = vector.load %arg6[%c0, %c0_0] : memref<128x128xi32, #tpu.memory_space<vmem>>, vector<128x128xi32>
    %cst = arith.constant -1.000000e+30 : f32
    %1 = vector.broadcast %cst : f32 to vector<128x128xf32>
    %c0_i32 = arith.constant 0 : i32
    %2 = vector.broadcast %c0_i32 : i32 to vector<128x128xi32>
    %3 = arith.cmpi eq, %0, %2 : vector<128x128xi32>
    %c0_1 = arith.constant 0 : index
    %4 = arith.index_cast %arg1 : i32 to index
    %5 = memref.load %arg2[%c0_1, %4] : memref<4x4xf32, #tpu.memory_space<smem>>
    %6 = vector.broadcast %5 : f32 to vector<128x128xf32>
    %7 = arith.select %3, %6, %1 : vector<128x128xi1>, vector<128x128xf32>
    %c1_i32 = arith.constant 1 : i32
    %8 = vector.broadcast %c1_i32 : i32 to vector<128x128xi32>
    %9 = arith.cmpi eq, %0, %8 : vector<128x128xi32>
    %c1 = arith.constant 1 : index
    %10 = arith.index_cast %arg1 : i32 to index
    %11 = memref.load %arg2[%c1, %10] : memref<4x4xf32, #tpu.memory_space<smem>>
    %12 = vector.broadcast %11 : f32 to vector<128x128xf32>
    %13 = arith.select %9, %12, %7 : vector<128x128xi1>, vector<128x128xf32>
    %c2_i32 = arith.constant 2 : i32
    %14 = vector.broadcast %c2_i32 : i32 to vector<128x128xi32>
    %15 = arith.cmpi eq, %0, %14 : vector<128x128xi32>
    %c2 = arith.constant 2 : index
    %16 = arith.index_cast %arg1 : i32 to index
    %17 = memref.load %arg2[%c2, %16] : memref<4x4xf32, #tpu.memory_space<smem>>
    %18 = vector.broadcast %17 : f32 to vector<128x128xf32>
    %19 = arith.select %15, %18, %13 : vector<128x128xi1>, vector<128x128xf32>
    %c3_i32 = arith.constant 3 : i32
    %20 = vector.broadcast %c3_i32 : i32 to vector<128x128xi32>
    %21 = arith.cmpi eq, %0, %20 : vector<128x128xi32>
    %c3 = arith.constant 3 : index
    %22 = arith.index_cast %arg1 : i32 to index
    %23 = memref.load %arg2[%c3, %22] : memref<4x4xf32, #tpu.memory_space<smem>>
    %24 = vector.broadcast %23 : f32 to vector<128x128xf32>
    %25 = arith.select %21, %24, %19 : vector<128x128xi1>, vector<128x128xf32>
    %c0_2 = arith.constant 0 : index
    %c0_3 = arith.constant 0 : index
    %c0_4 = arith.constant 0 : index
    %26 = vector.load %arg3[%c0_2, %c0_3, %c0_4] : memref<1x1x128xf32, #tpu.memory_space<vmem>>, vector<1x1x128xf32>
    %27 = vector.shape_cast %26 : vector<1x1x128xf32> to vector<1x128xf32>
    %c0_5 = arith.constant 0 : index
    %c0_6 = arith.constant 0 : index
    %c0_7 = arith.constant 0 : index
    %28 = vector.load %arg4[%c0_5, %c0_6, %c0_7] : memref<1x128x1xf32, #tpu.memory_space<vmem>>, vector<1x128x1xf32>
    %29 = vector.shape_cast %28 : vector<1x128x1xf32> to vector<128x1xf32>
    %30 = vector.broadcast %27 : vector<1x128xf32> to vector<128x128xf32>
    %31 = vector.broadcast %29 : vector<128x1xf32> to vector<128x128xf32>
    %32 = arith.addf %30, %31 : vector<128x128xf32>
    %33 = arith.addf %32, %25 : vector<128x128xf32>
    %cst_8 = arith.constant 0.000000e+00 : f32
    %34 = vector.broadcast %cst_8 : f32 to vector<128x128xf32>
    %35 = arith.cmpf ogt, %33, %34 : vector<128x128xf32>
    %cst_9 = arith.constant 2.000000e-01 : f32
    %36 = vector.broadcast %cst_9 : f32 to vector<128x128xf32>
    %37 = arith.mulf %36, %33 : vector<128x128xf32>
    %38 = arith.select %35, %33, %37 : vector<128x128xi1>, vector<128x128xf32>
    %cst_10 = arith.constant dense<0xFF800000> : vector<128xf32>
    %39 = vector.multi_reduction <maximumf>, %38, %cst_10 [1] : vector<128x128xf32> to vector<128xf32>
    %40 = vector.shape_cast %39 : vector<128xf32> to vector<128x1xf32>
    %41 = vector.broadcast %40 : vector<128x1xf32> to vector<128x128xf32>
    %42 = arith.subf %38, %41 : vector<128x128xf32>
    %43 = math.exp %42 : vector<128x128xf32>
    %cst_11 = arith.constant dense<0.000000e+00> : vector<128xf32>
    %44 = vector.multi_reduction <add>, %43, %cst_11 [1] : vector<128x128xf32> to vector<128xf32>
    %45 = vector.shape_cast %44 : vector<128xf32> to vector<128x1xf32>
    %46 = tpu.reciprocal %45 {approx = true} : vector<128x1xf32> -> vector<128x1xf32>
    %47 = vector.broadcast %46 : vector<128x1xf32> to vector<128x128xf32>
    %48 = arith.mulf %43, %47 : vector<128x128xf32>
    %49 = arith.truncf %48 : vector<128x128xf32> to vector<128x128xbf16>
    %c0_12 = arith.constant 0 : index
    %c0_13 = arith.constant 0 : index
    %c0_14 = arith.constant 0 : index
    %50 = vector.load %arg5[%c0_12, %c0_13, %c0_14] : memref<1x128x32xbf16, #tpu.memory_space<vmem>>, vector<1x128x32xbf16>
    %51 = vector.shape_cast %50 : vector<1x128x32xbf16> to vector<128x32xbf16>
    %cst_15 = arith.constant dense<0.000000e+00> : vector<128x32xf32>
    %52 = tpu.matmul %49, %51, %cst_15 {dimension_numbers = #tpu.dot_dimension_numbers<[1], [0], [0], [1], [0, 0, 1, 1], [], []>} : vector<128x128xbf16>, vector<128x32xbf16>, vector<128x32xf32> -> vector<128x32xf32>
    %c0_16 = arith.constant 0 : index
    %c0_17 = arith.constant 0 : index
    %c0_18 = arith.constant 0 : index
    %53 = vector.load %arg7[%c0_16, %c0_17, %c0_18] : memref<1x128x128xbf16, #tpu.memory_space<vmem>>, vector<1x128x128xbf16>
    %54 = vector.shape_cast %53 : vector<1x128x128xbf16> to vector<128x128xbf16>
    %55 = vector.shape_cast %49 : vector<128x128xbf16> to vector<1x128x128xbf16>
    tpu.vector_store %arg7[%c0_16, %c0_17, %c0_18], %55 {strides = array<i32>} : memref<1x128x128xbf16, #tpu.memory_space<vmem>>, vector<1x128x128xbf16>,
    %c0_19 = arith.constant 0 : index
    %c0_20 = arith.constant 0 : index
    %c0_21 = arith.constant 0 : index
    %56 = vector.load %arg8[%c0_19, %c0_20, %c0_21] : memref<1x128x32xf32, #tpu.memory_space<vmem>>, vector<1x128x32xf32>
    %57 = vector.shape_cast %56 : vector<1x128x32xf32> to vector<128x32xf32>
    %58 = vector.shape_cast %52 : vector<128x32xf32> to vector<1x128x32xf32>
    tpu.vector_store %arg8[%c0_19, %c0_20, %c0_21], %58 {strides = array<i32>} : memref<1x128x32xf32, #tpu.memory_space<vmem>>, vector<1x128x32xf32>,
    return
  }
  func.func @transform_0(%arg0: i32, %arg1: i32) -> (i32, i32) {
    %c0_i32 = arith.constant 0 : i32
    %c0_i32_0 = arith.constant 0 : i32
    %c0_i32_1 = arith.constant 0 : i32
    return %c0_i32, %c0_i32_0 : i32, i32
  }
  func.func @transform_1(%arg0: i32, %arg1: i32) -> (i32, i32, i32) {
    %c0_i32 = arith.constant 0 : i32
    %c0_i32_0 = arith.constant 0 : i32
    %c0_i32_1 = arith.constant 0 : i32
    return %arg1, %c0_i32, %c0_i32_0 : i32, i32, i32
  }
  func.func @transform_2(%arg0: i32, %arg1: i32) -> (i32, i32, i32) {
    %c0_i32 = arith.constant 0 : i32
    %c0_i32_0 = arith.constant 0 : i32
    return %arg1, %arg0, %c0_i32 : i32, i32, i32
  }
  func.func @transform_3(%arg0: i32, %arg1: i32) -> (i32, i32, i32) {
    %c0_i32 = arith.constant 0 : i32
    %c0_i32_0 = arith.constant 0 : i32
    %c0_i32_1 = arith.constant 0 : i32
    return %arg1, %c0_i32, %c0_i32_0 : i32, i32, i32
  }
  func.func @transform_4(%arg0: i32, %arg1: i32) -> (i32, i32) {
    %c0_i32 = arith.constant 0 : i32
    %c0_i32_0 = arith.constant 0 : i32
    return %arg0, %c0_i32 : i32, i32
  }
  func.func @transform_5(%arg0: i32, %arg1: i32) -> (i32, i32, i32) {
    %c0_i32 = arith.constant 0 : i32
    %c0_i32_0 = arith.constant 0 : i32
    return %arg1, %arg0, %c0_i32 : i32, i32, i32
  }
  func.func @transform_6(%arg0: i32, %arg1: i32) -> (i32, i32, i32) {
    %c0_i32 = arith.constant 0 : i32
    %c0_i32_0 = arith.constant 0 : i32
    return %arg1, %arg0, %c0_i32 : i32, i32, i32
  }
}

</mosaic_0001>

<llo_original>
// kernel: changed_gat_conv_forward.1
$region0: #{changed_gat_conv_forward.1}
  #allocation0 [shape = 'u32[]', space=smem, size = 0x4, offset = 0x4, fixed_abs, tag = 'smem constant byte address 0x4 - core index']
  #allocation1 [shape = 'u32[72,128]{1,0:T(1,128)}', space=vmem, size = 0x9000, scoped, tag = 'internal scratch']
  %s0 = inlined_call_operand.vmem [shape: f32[4,4], index: 0, kind: input, shape index: {}]
  %s1 = inlined_call_operand.vmem [shape: f32[4,1,128], index: 1, kind: input, shape index: {}]
  %s2 = inlined_call_operand.vmem [shape: f32[4,128,1], index: 2, kind: input, shape index: {}]
  %s3 = inlined_call_operand.vmem [shape: bf16[4,128,32], index: 3, kind: input, shape index: {}]
  %s4 = inlined_call_operand.vmem [shape: s32[128,128], index: 4, kind: input, shape index: {}]
  %s5 = inlined_call_operand.vmem [shape: bf16[4,128,128], index: 5, kind: output, shape index: {0}]
  %s6 = inlined_call_operand.vmem [shape: f32[4,128,32], index: 6, kind: output, shape index: {1}]
  %7 = xla_tuple %s5, %s6
  %s8 = sld [smem:[#allocation0]]
  $region65: #{changed_gat_conv_forward.1} parent=0
    _
  %s10 = ssub.s32 1, %s8
  %s11 = scalar_select 0, %s10, %s8
  $region1: #{changed_gat_conv_forward.1} parent=0
    #allocation2 [shape = 'u8[2048]{0}', space=smem, size = 0x800, scoped, tag = 'input window, operand 0, single buffered']
    #allocation3 [shape = 's32[2]{0}', space=sflag, size = 0x8, scoped, tag = 'scoped memory for changed_gat_conv_forward.1']
    %12 = vsyncpa [#allocation3], 0
    loop: start=0, step=1, limit=6
    $region2: #{changed_gat_conv_forward.1} parent=1 // loop_pre_header
      _
    $region3: #{changed_gat_conv_forward.1} parent=1 // loop_header
      %s14 = sphi 0, %s18
      %p15 = scmp.ge.s32.totalorder %s14, 6
      %s21 = sphi 0, %s33
      %s22 = sphi 0, %s29
      %s23 = sphi 0, %s21
      %s24 = sphi 0, %s22
      %s25 = sphi 0, %s23
      %s26 = sphi 0, %s24
      %s34 = sphi 0, %s34
      %s36 = sphi 0, %s34
      %s37 = sphi 0, %s36
      %s51 = sphi 0, %s37
      %s57 = sphi 0, %s59
      %s60 = sphi 0, %s57
      %s61 = sphi 0, %s60
      %s77 = sphi 0, %s61
      %s85 = sphi 0, %s87
      %s88 = sphi 0, %s85
      %s89 = sphi 0, %s88
      %s105 = sphi 0, %s89
      %s111 = sphi 0, %s113
      %s114 = sphi 0, %s111
      %s115 = sphi 0, %s114
      %s131 = sphi 0, %s115
      %s137 = sphi 0, %s139
      %s140 = sphi 0, %s137
      %s141 = sphi 0, %s140
      %s157 = sphi 0, %s141
      %s165 = sphi 0, %s167
      %s168 = sphi 0, %s165
      %s169 = sphi 0, %s168
      %s185 = sphi 0, %s169
      %s193 = sphi 0, %s195
      %s196 = sphi 0, %s193
      %s197 = sphi 0, %s196
      %s213 = sphi 0, %s197
    $region4: #{changed_gat_conv_forward.1} parent=1 // loop_header_branch
      %17 = sbr.rel (%p15) target = $region8
    $region5: #{changed_gat_conv_forward.1} parent=1 // loop_body
      %s19 = ssub.s32 %s14, 1
      %s20 = ssub.s32 %s14, 2
      %s27 = sadd.s32 1, %s22
      %p28 = scmp.ge.s32.totalorder %s27, 4
      %s29 = scalar_select %p28, 0, %s27
      %s30 = sadd.s32 1, %s21
      %s31 = scalar_select %p28, %s30, %s21
      %p32 = scmp.ge.s32.totalorder %s31, 1
      %s33 = scalar_select %p32, 0, %s31
      %s35 = sadd.s32 %s34, 1
      %p38 = scmp.eq.s32.totalorder %s14, 3
      %p39 = scmp.ne.s32.totalorder %s34, %s36
      %p40 = scmp.eq.s32.totalorder %s14, 0
      %p41 = por %p39, %p40
      %p42 = scmp.ne.s32.totalorder %s34, %s36
      %p43 = scmp.eq.s32.totalorder %s19, 3
      %p44 = por %p42, %p43
      %p45 = scmp.ne.s32.totalorder %s36, %s37
      %p46 = scmp.eq.s32.totalorder %s19, 0
      %p47 = por %p45, %p46
      %p48 = scmp.ne.s32.totalorder %s36, %s37
      %p49 = scmp.eq.s32.totalorder %s20, 3
      %p50 = por %p48, %p49
      %p52 = scmp.ne.s32.totalorder %s37, %s51
      %p53 = scmp.eq.s32.totalorder %s20, 0
      %p54 = por %p52, %p53
      %s55 = ssub.s32 %s22, %s29
      %p56 = scmp.eq.s32.totalorder %s55, 0
      %s58 = sadd.s32 %s57, 1
      %s59 = scalar_select %p56, %s57, %s58
      %p62 = pneg %p56
      %p63 = scmp.eq.s32.totalorder %s14, 3
      %p64 = por %p62, %p63
      %p65 = scmp.ne.s32.totalorder %s57, %s60
      %p66 = scmp.eq.s32.totalorder %s14, 0
      %p67 = por %p65, %p66
      %p68 = scmp.ne.s32.totalorder %s57, %s60
      %p69 = scmp.eq.s32.totalorder %s19, 3
      %p70 = por %p68, %p69
      %p71 = scmp.ne.s32.totalorder %s60, %s61
      %p72 = scmp.eq.s32.totalorder %s19, 0
      %p73 = por %p71, %p72
      %p74 = scmp.ne.s32.totalorder %s60, %s61
      %p75 = scmp.eq.s32.totalorder %s20, 3
      %p76 = por %p74, %p75
      %p78 = scmp.ne.s32.totalorder %s61, %s77
      %p79 = scmp.eq.s32.totalorder %s20, 0
      %p80 = por %p78, %p79
      %s81 = ssub.s32 %s22, %s29
      %s82 = ssub.s32 %s21, %s33
      %s83 = sor.u32 %s81, %s82
      %p84 = scmp.eq.s32.totalorder %s83, 0
      %s86 = sadd.s32 %s85, 1
      %s87 = scalar_select %p84, %s85, %s86
      %p90 = pneg %p84
      %p91 = scmp.eq.s32.totalorder %s14, 3
      %p92 = por %p90, %p91
      %p93 = scmp.ne.s32.totalorder %s85, %s88
      %p94 = scmp.eq.s32.totalorder %s14, 0
      %p95 = por %p93, %p94
      %p96 = scmp.ne.s32.totalorder %s85, %s88
      %p97 = scmp.eq.s32.totalorder %s19, 3
      %p98 = por %p96, %p97
      %p99 = scmp.ne.s32.totalorder %s88, %s89
      %p100 = scmp.eq.s32.totalorder %s19, 0
      %p101 = por %p99, %p100
      %p102 = scmp.ne.s32.totalorder %s88, %s89
      %p103 = scmp.eq.s32.totalorder %s20, 3
      %p104 = por %p102, %p103
      %p106 = scmp.ne.s32.totalorder %s89, %s105
      %p107 = scmp.eq.s32.totalorder %s20, 0
      %p108 = por %p106, %p107
      %s109 = ssub.s32 %s22, %s29
      %p110 = scmp.eq.s32.totalorder %s109, 0
      %s112 = sadd.s32 %s111, 1
      %s113 = scalar_select %p110, %s111, %s112
      %p116 = pneg %p110
      %p117 = scmp.eq.s32.totalorder %s14, 3
      %p118 = por %p116, %p117
      %p119 = scmp.ne.s32.totalorder %s111, %s114
      %p120 = scmp.eq.s32.totalorder %s14, 0
      %p121 = por %p119, %p120
      %p122 = scmp.ne.s32.totalorder %s111, %s114
      %p123 = scmp.eq.s32.totalorder %s19, 3
      %p124 = por %p122, %p123
      %p125 = scmp.ne.s32.totalorder %s114, %s115
      %p126 = scmp.eq.s32.totalorder %s19, 0
      %p127 = por %p125, %p126
      %p128 = scmp.ne.s32.totalorder %s114, %s115
      %p129 = scmp.eq.s32.totalorder %s20, 3
      %p130 = por %p128, %p129
      %p132 = scmp.ne.s32.totalorder %s115, %s131
      %p133 = scmp.eq.s32.totalorder %s20, 0
      %p134 = por %p132, %p133
      %s135 = ssub.s32 %s21, %s33
      %p136 = scmp.eq.s32.totalorder %s135, 0
      %s138 = sadd.s32 %s137, 1
      %s139 = scalar_select %p136, %s137, %s138
      %p142 = pneg %p136
      %p143 = scmp.eq.s32.totalorder %s14, 3
      %p144 = por %p142, %p143
      %p145 = scmp.ne.s32.totalorder %s137, %s140
      %p146 = scmp.eq.s32.totalorder %s14, 0
      %p147 = por %p145, %p146
      %p148 = scmp.ne.s32.totalorder %s137, %s140
      %p149 = scmp.eq.s32.totalorder %s19, 3
      %p150 = por %p148, %p149
      %p151 = scmp.ne.s32.totalorder %s140, %s141
      %p152 = scmp.eq.s32.totalorder %s19, 0
      %p153 = por %p151, %p152
      %p154 = scmp.ne.s32.totalorder %s140, %s141
      %p155 = scmp.eq.s32.totalorder %s20, 3
      %p156 = por %p154, %p155
      %p158 = scmp.ne.s32.totalorder %s141, %s157
      %p159 = scmp.eq.s32.totalorder %s20, 0
      %p160 = por %p158, %p159
      %s161 = ssub.s32 %s22, %s29
      %s162 = ssub.s32 %s21, %s33
      %s163 = sor.u32 %s161, %s162
      %p164 = scmp.eq.s32.totalorder %s163, 0
      %s166 = sadd.s32 %s165, 1
      %s167 = scalar_select %p164, %s165, %s166
      %p170 = pneg %p164
      %p171 = scmp.eq.s32.totalorder %s14, 3
      %p172 = por %p170, %p171
      %p173 = scmp.ne.s32.totalorder %s165, %s168
      %p174 = scmp.eq.s32.totalorder %s14, 0
      %p175 = por %p173, %p174
      %p176 = scmp.ne.s32.totalorder %s165, %s168
      %p177 = scmp.eq.s32.totalorder %s19, 3
      %p178 = por %p176, %p177
      %p179 = scmp.ne.s32.totalorder %s168, %s169
      %p180 = scmp.eq.s32.totalorder %s19, 0
      %p181 = por %p179, %p180
      %p182 = scmp.ne.s32.totalorder %s168, %s169
      %p183 = scmp.eq.s32.totalorder %s20, 3
      %p184 = por %p182, %p183
      %p186 = scmp.ne.s32.totalorder %s169, %s185
      %p187 = scmp.eq.s32.totalorder %s20, 0
      %p188 = por %p186, %p187
      %s189 = ssub.s32 %s22, %s29
      %s190 = ssub.s32 %s21, %s33
      %s191 = sor.u32 %s189, %s190
      %p192 = scmp.eq.s32.totalorder %s191, 0
      %s194 = sadd.s32 %s193, 1
      %s195 = scalar_select %p192, %s193, %s194
      %p198 = pneg %p192
      %p199 = scmp.eq.s32.totalorder %s14, 3
      %p200 = por %p198, %p199
      %p201 = scmp.ne.s32.totalorder %s193, %s196
      %p202 = scmp.eq.s32.totalorder %s14, 0
      %p203 = por %p201, %p202
      %p204 = scmp.ne.s32.totalorder %s193, %s196
      %p205 = scmp.eq.s32.totalorder %s19, 3
      %p206 = por %p204, %p205
      %p207 = scmp.ne.s32.totalorder %s196, %s197
      %p208 = scmp.eq.s32.totalorder %s19, 0
      %p209 = por %p207, %p208
      %p210 = scmp.ne.s32.totalorder %s196, %s197
      %p211 = scmp.eq.s32.totalorder %s20, 3
      %p212 = por %p210, %p211
      %p214 = scmp.ne.s32.totalorder %s197, %s213
      %p215 = scmp.eq.s32.totalorder %s20, 0
      %p216 = por %p214, %p215
      %p217 = scmp.le.s32.totalorder 1, %s14
      %p218 = scmp.lt.s32.totalorder %s14, 5
      %p219 = pnand %p217, %p218
      %p220 = pneg %p219
      // Predicated region
      $region9: #{changed_gat_conv_forward.1} parent=5 // pred_check
        _
      $region10: #{changed_gat_conv_forward.1} parent=5 // pred_check_branch
        %222 = sbr.rel (%p219) target = $region12
      $region11: #{changed_gat_conv_forward.1} parent=5 // pred_region
        %s223 = ssub.s32 %s14, 1
        // Predicated region
        $region13: #{changed_gat_conv_forward.1} parent=11 // pred_check
          %p224 = pneg %p47
        $region14: #{changed_gat_conv_forward.1} parent=11 // pred_check_branch
          %226 = sbr.rel (%p224) target = $region16
        $region15: #{changed_gat_conv_forward.1} parent=11 // pred_region
          %228 = vsyncadd [#allocation3], 0
          %s230 = sshll.u32 %s0, 4
          %s231 = int_to_ptr.vmem [resolvable:$true] %s230
          %233 = dma.vmem_to_smem %s231, 64, [#allocation2], [#allocation3]
        $region16: #{changed_gat_conv_forward.1} parent=11 // pred_fallthru
          _
        // Predicated region
        $region17: #{changed_gat_conv_forward.1} parent=11 // pred_check
          %p234 = pneg %p153
        $region18: #{changed_gat_conv_forward.1} parent=11 // pred_check_branch
          %236 = sbr.rel (%p234) target = $region20
        $region19: #{changed_gat_conv_forward.1} parent=11 // pred_region
          %s237 = smul.u32 16, %s23
          %p238 = scmp.lt.s32.totalorder %s237, 15
          %s239 = scalar_select %p238, %s237, 15
          %s240 = smul.addr %s239, 8
          %s241 = scalar_lea.vmem %s4, %s240
          %s242 = smul.u32 16, %s23
        $region20: #{changed_gat_conv_forward.1} parent=11 // pred_fallthru
          _
      $region12: #{changed_gat_conv_forward.1} parent=5 // pred_fallthru
        _
      %p243 = scmp.lt.s32.totalorder %s14, 4
      // Predicated region
      $region21: #{changed_gat_conv_forward.1} parent=5 // pred_check
        %p244 = pneg %p243
      $region22: #{changed_gat_conv_forward.1} parent=5 // pred_check_branch
        %246 = sbr.rel (%p244) target = $region24
      $region23: #{changed_gat_conv_forward.1} parent=5 // pred_region
        // Predicated region
        $region25: #{changed_gat_conv_forward.1} parent=23 // pred_check
          %p247 = pneg %p67
        $region26: #{changed_gat_conv_forward.1} parent=23 // pred_check_branch
          %249 = sbr.rel (%p247) target = $region28
        $region27: #{changed_gat_conv_forward.1} parent=23 // pred_region
          %p250 = scmp.lt.s32.totalorder %s22, 3
          %s251 = scalar_select %p250, %s22, 3
          %s252 = scalar_lea.vmem %s1, %s251
        $region28: #{changed_gat_conv_forward.1} parent=23 // pred_fallthru
          _
        // Predicated region
        $region29: #{changed_gat_conv_forward.1} parent=23 // pred_check
          %p253 = pneg %p95
        $region30: #{changed_gat_conv_forward.1} parent=23 // pred_check_branch
          %255 = sbr.rel (%p253) target = $region32
        $region31: #{changed_gat_conv_forward.1} parent=23 // pred_region
          %s256 = smul.u32 16, %s21
          %p257 = scmp.lt.s32.totalorder %s22, 3
          %s258 = scalar_select %p257, %s22, 3
          %p259 = scmp.lt.s32.totalorder %s256, 15
          %s260 = scalar_select %p259, %s256, 15
          %s261 = smul.addr %s258, 16
          %s262 = sadd.s32 %s260, %s261
          %s263 = smul.addr %s262, 8
          %s264 = scalar_lea.vmem %s2, %s263
          %s265 = smul.u32 16, %s21
        $region32: #{changed_gat_conv_forward.1} parent=23 // pred_fallthru
          _
        // Predicated region
        $region33: #{changed_gat_conv_forward.1} parent=23 // pred_check
          %p266 = pneg %p121
        $region34: #{changed_gat_conv_forward.1} parent=23 // pred_check_branch
          %268 = sbr.rel (%p266) target = $region36
        $region35: #{changed_gat_conv_forward.1} parent=23 // pred_region
          %p269 = scmp.lt.s32.totalorder %s22, 3
          %s270 = scalar_select %p269, %s22, 3
          %s271 = smul.addr %s270, 16
          %s272 = smul.addr %s271, 4
          %s273 = scalar_lea.vmem %s3, %s272
        $region36: #{changed_gat_conv_forward.1} parent=23 // pred_fallthru
          _
      $region24: #{changed_gat_conv_forward.1} parent=5 // pred_fallthru
        _
      %p274 = scmp.le.s32.totalorder 1, %s14
      %p275 = scmp.lt.s32.totalorder %s14, 5
      %p276 = pnand %p274, %p275
      %p277 = pneg %p276
      // Predicated region
      $region37: #{changed_gat_conv_forward.1} parent=5 // pred_check
        _
      $region38: #{changed_gat_conv_forward.1} parent=5 // pred_check_branch
        %279 = sbr.rel (%p276) target = $region40
      $region39: #{changed_gat_conv_forward.1} parent=5 // pred_region
        %s280 = ssub.s32 %s14, 1
        // Predicated region
        $region41: #{changed_gat_conv_forward.1} parent=39 // pred_check
          %p281 = pneg %p47
        $region42: #{changed_gat_conv_forward.1} parent=39 // pred_check_branch
          %283 = sbr.rel (%p281) target = $region44
        $region43: #{changed_gat_conv_forward.1} parent=39 // pred_region
          %285 = dma.done [#allocation3], 64
        $region44: #{changed_gat_conv_forward.1} parent=39 // pred_fallthru
          _
        %286 = sfence
        %p287 = pneg %p47
        %p288 = pneg %p44
        %p289 = scmp.lt.s32.totalorder %s24, 3
        %s290 = scalar_select %p289, %s24, 3
        %s291 = scalar_lea.vmem %s1, %s290
        %p292 = pneg %p73
        %p293 = pneg %p70
        %s294 = smul.u32 16, %s23
        %p295 = scmp.lt.s32.totalorder %s24, 3
        %s296 = scalar_select %p295, %s24, 3
        %p297 = scmp.lt.s32.totalorder %s294, 15
        %s298 = scalar_select %p297, %s294, 15
        %s299 = smul.addr %s296, 16
        %s300 = sadd.s32 %s298, %s299
        %s301 = smul.addr %s300, 8
        %s302 = scalar_lea.vmem %s2, %s301
        %p303 = pneg %p101
        %p304 = pneg %p98
        %p305 = scmp.lt.s32.totalorder %s24, 3
        %s306 = scalar_select %p305, %s24, 3
        %s307 = smul.addr %s306, 16
        %s308 = smul.addr %s307, 4
        %s309 = scalar_lea.vmem %s3, %s308
        %p310 = pneg %p127
        %p311 = pneg %p124
        %s312 = smul.u32 16, %s23
        %p313 = scmp.lt.s32.totalorder %s312, 15
        %s314 = scalar_select %p313, %s312, 15
        %s315 = smul.addr %s314, 8
        %s316 = scalar_lea.vmem %s4, %s315
        %p317 = pneg %p153
        %p318 = pneg %p150
        %p319 = pneg %p181
        %p320 = pneg %p178
        %s321 = smul.u32 16, %s23
        %p322 = scmp.lt.s32.totalorder %s24, 3
        %s323 = scalar_select %p322, %s24, 3
        %p324 = scmp.lt.s32.totalorder %s321, 15
        %s325 = scalar_select %p324, %s321, 15
        %s326 = smul.addr %s323, 16
        %s327 = sadd.s32 %s325, %s326
        %s328 = smul.addr %s327, 4
        %s329 = scalar_lea.vmem %s5, %s328
        %p330 = pneg %p209
        %p331 = pneg %p206
        %s332 = smul.u32 16, %s23
        %p333 = scmp.lt.s32.totalorder %s24, 3
        %s334 = scalar_select %p333, %s24, 3
        %p335 = scmp.lt.s32.totalorder %s332, 15
        %s336 = scalar_select %p335, %s332, 15
        %s337 = smul.addr %s334, 16
        %s338 = sadd.s32 %s336, %s337
        %s339 = smul.addr %s338, 8
        %s340 = scalar_lea.vmem %s6, %s339
        %p341 = scmp.lt.s32.totalorder %s24, 3
        %s342 = scalar_select %p341, %s24, 3
        %s343 = scalar_lea.vmem %s1, %s342
        %s344 = smul.u32 16, %s23
        %p345 = scmp.lt.s32.totalorder %s24, 3
        %s346 = scalar_select %p345, %s24, 3
        %p347 = scmp.lt.s32.totalorder %s344, 15
        %s348 = scalar_select %p347, %s344, 15
        %s349 = smul.addr %s346, 16
        %s350 = sadd.s32 %s348, %s349
        %s351 = smul.addr %s350, 8
        %s352 = scalar_lea.vmem %s2, %s351
        %s353 = smul.u32 16, %s23
        %p354 = scmp.lt.s32.totalorder %s24, 3
        %s355 = scalar_select %p354, %s24, 3
        %s356 = smul.addr %s355, 16
        %s357 = smul.addr %s356, 4
        %s358 = scalar_lea.vmem %s3, %s357
        %s359 = smul.u32 16, %s23
        %p360 = scmp.lt.s32.totalorder %s359, 15
        %s361 = scalar_select %p360, %s359, 15
        %s362 = smul.addr %s361, 8
        %s363 = scalar_lea.vmem %s4, %s362
        %s364 = smul.u32 16, %s23
        %s365 = smul.u32 16, %s23
        %p366 = scmp.lt.s32.totalorder %s24, 3
        %s367 = scalar_select %p366, %s24, 3
        %p368 = scmp.lt.s32.totalorder %s365, 15
        %s369 = scalar_select %p368, %s365, 15
        %s370 = smul.addr %s367, 16
        %s371 = sadd.s32 %s369, %s370
        %s372 = smul.addr %s371, 4
        %s373 = scalar_lea.vmem %s5, %s372
        %s374 = smul.u32 16, %s23
        %s375 = smul.u32 16, %s23
        %p376 = scmp.lt.s32.totalorder %s24, 3
        %s377 = scalar_select %p376, %s24, 3
        %p378 = scmp.lt.s32.totalorder %s375, 15
        %s379 = scalar_select %p378, %s375, 15
        %s380 = smul.addr %s377, 16
        %s381 = sadd.s32 %s379, %s380
        %s382 = smul.addr %s381, 8
        %s383 = scalar_lea.vmem %s6, %s382
        %s384 = smul.u32 16, %s23
        %v385 = vld [vmem:[%s363] sm:$0xff]
        %v386 = vld [vmem:[%s363 + $0x8] sm:$0xff]
        %v387 = vld [vmem:[%s363 + $0x10] sm:$0xff]
        %v388 = vld [vmem:[%s363 + $0x18] sm:$0xff]
        %v389 = vld [vmem:[%s363 + $0x20] sm:$0xff]
        %v390 = vld [vmem:[%s363 + $0x28] sm:$0xff]
        %v391 = vld [vmem:[%s363 + $0x30] sm:$0xff]
        %v392 = vld [vmem:[%s363 + $0x38] sm:$0xff]
        %v393 = vld [vmem:[%s363 + $0x40] sm:$0xff]
        %v394 = vld [vmem:[%s363 + $0x48] sm:$0xff]
        %v395 = vld [vmem:[%s363 + $0x50] sm:$0xff]
        %v396 = vld [vmem:[%s363 + $0x58] sm:$0xff]
        %v397 = vld [vmem:[%s363 + $0x60] sm:$0xff]
        %v398 = vld [vmem:[%s363 + $0x68] sm:$0xff]
        %v399 = vld [vmem:[%s363 + $0x70] sm:$0xff]
        %v400 = vld [vmem:[%s363 + $0x78] sm:$0xff]
        %vm401 = vcmp.eq.s32.totalorder %v385, 0
        %vm402 = vcmp.eq.s32.totalorder %v386, 0
        %vm403 = vcmp.eq.s32.totalorder %v387, 0
        %vm404 = vcmp.eq.s32.totalorder %v388, 0
        %vm405 = vcmp.eq.s32.totalorder %v389, 0
        %vm406 = vcmp.eq.s32.totalorder %v390, 0
        %vm407 = vcmp.eq.s32.totalorder %v391, 0
        %vm408 = vcmp.eq.s32.totalorder %v392, 0
        %vm409 = vcmp.eq.s32.totalorder %v393, 0
        %vm410 = vcmp.eq.s32.totalorder %v394, 0
        %vm411 = vcmp.eq.s32.totalorder %v395, 0
        %vm412 = vcmp.eq.s32.totalorder %v396, 0
        %vm413 = vcmp.eq.s32.totalorder %v397, 0
        %vm414 = vcmp.eq.s32.totalorder %v398, 0
        %vm415 = vcmp.eq.s32.totalorder %v399, 0
        %vm416 = vcmp.eq.s32.totalorder %v400, 0
        %s417 = sld [smem:[#allocation2 + %s24]]
        %v418 = vstv %s417
        %v419 = vsel %vm401, %v418, -1e+30
        %v420 = vsel %vm402, %v418, -1e+30
        %v421 = vsel %vm403, %v418, -1e+30
        %v422 = vsel %vm404, %v418, -1e+30
        %v423 = vsel %vm405, %v418, -1e+30
        %v424 = vsel %vm406, %v418, -1e+30
        %v425 = vsel %vm407, %v418, -1e+30
        %v426 = vsel %vm408, %v418, -1e+30
        %v427 = vsel %vm409, %v418, -1e+30
        %v428 = vsel %vm410, %v418, -1e+30
        %v429 = vsel %vm411, %v418, -1e+30
        %v430 = vsel %vm412, %v418, -1e+30
        %v431 = vsel %vm413, %v418, -1e+30
        %v432 = vsel %vm414, %v418, -1e+30
        %v433 = vsel %vm415, %v418, -1e+30
        %v434 = vsel %vm416, %v418, -1e+30
        %vm435 = vcmp.eq.s32.totalorder %v385, 1
        %vm436 = vcmp.eq.s32.totalorder %v386, 1
        %vm437 = vcmp.eq.s32.totalorder %v387, 1
        %vm438 = vcmp.eq.s32.totalorder %v388, 1
        %vm439 = vcmp.eq.s32.totalorder %v389, 1
        %vm440 = vcmp.eq.s32.totalorder %v390, 1
        %vm441 = vcmp.eq.s32.totalorder %v391, 1
        %vm442 = vcmp.eq.s32.totalorder %v392, 1
        %vm443 = vcmp.eq.s32.totalorder %v393, 1
        %vm444 = vcmp.eq.s32.totalorder %v394, 1
        %vm445 = vcmp.eq.s32.totalorder %v395, 1
        %vm446 = vcmp.eq.s32.totalorder %v396, 1
        %vm447 = vcmp.eq.s32.totalorder %v397, 1
        %vm448 = vcmp.eq.s32.totalorder %v398, 1
        %vm449 = vcmp.eq.s32.totalorder %v399, 1
        %vm450 = vcmp.eq.s32.totalorder %v400, 1
        %s451 = sshra.s32 %s24, 7
        %s452 = sand.u32 %s24, 127
        %s453 = sadd.s32 %s451, 1
        %s454 = smul.u32 %s453, 128
        %s455 = sshra.s32 %s24, 7
        %s456 = sand.u32 %s24, 127
        %s457 = sadd.s32 %s454, %s456
        %s458 = sld [smem:[#allocation2 + %s457]]
        %v459 = vstv %s458
        %v460 = vsel %vm435, %v459, %v419
        %v461 = vsel %vm436, %v459, %v420
        %v462 = vsel %vm437, %v459, %v421
        %v463 = vsel %vm438, %v459, %v422
        %v464 = vsel %vm439, %v459, %v423
        %v465 = vsel %vm440, %v459, %v424
        %v466 = vsel %vm441, %v459, %v425
        %v467 = vsel %vm442, %v459, %v426
        %v468 = vsel %vm443, %v459, %v427
        %v469 = vsel %vm444, %v459, %v428
        %v470 = vsel %vm445, %v459, %v429
        %v471 = vsel %vm446, %v459, %v430
        %v472 = vsel %vm447, %v459, %v431
        %v473 = vsel %vm448, %v459, %v432
        %v474 = vsel %vm449, %v459, %v433
        %v475 = vsel %vm450, %v459, %v434
        %vm476 = vcmp.eq.s32.totalorder %v385, 2
        %vm477 = vcmp.eq.s32.totalorder %v386, 2
        %vm478 = vcmp.eq.s32.totalorder %v387, 2
        %vm479 = vcmp.eq.s32.totalorder %v388, 2
        %vm480 = vcmp.eq.s32.totalorder %v389, 2
        %vm481 = vcmp.eq.s32.totalorder %v390, 2
        %vm482 = vcmp.eq.s32.totalorder %v391, 2
        %vm483 = vcmp.eq.s32.totalorder %v392, 2
        %vm484 = vcmp.eq.s32.totalorder %v393, 2
        %vm485 = vcmp.eq.s32.totalorder %v394, 2
        %vm486 = vcmp.eq.s32.totalorder %v395, 2
        %vm487 = vcmp.eq.s32.totalorder %v396, 2
        %vm488 = vcmp.eq.s32.totalorder %v397, 2
        %vm489 = vcmp.eq.s32.totalorder %v398, 2
        %vm490 = vcmp.eq.s32.totalorder %v399, 2
        %vm491 = vcmp.eq.s32.totalorder %v400, 2
        %s492 = sadd.s32 %s451, 2
        %s493 = smul.u32 %s492, 128
        %s494 = sadd.s32 %s493, %s456
        %s495 = sld [smem:[#allocation2 + %s494]]
        %v496 = vstv %s495
        %v497 = vsel %vm476, %v496, %v460
        %v498 = vsel %vm477, %v496, %v461
        %v499 = vsel %vm478, %v496, %v462
        %v500 = vsel %vm479, %v496, %v463
        %v501 = vsel %vm480, %v496, %v464
        %v502 = vsel %vm481, %v496, %v465
        %v503 = vsel %vm482, %v496, %v466
        %v504 = vsel %vm483, %v496, %v467
        %v505 = vsel %vm484, %v496, %v468
        %v506 = vsel %vm485, %v496, %v469
        %v507 = vsel %vm486, %v496, %v470
        %v508 = vsel %vm487, %v496, %v471
        %v509 = vsel %vm488, %v496, %v472
        %v510 = vsel %vm489, %v496, %v473
        %v511 = vsel %vm490, %v496, %v474
        %v512 = vsel %vm491, %v496, %v475
        %vm513 = vcmp.eq.s32.totalorder %v385, 3
        %vm514 = vcmp.eq.s32.totalorder %v386, 3
        %vm515 = vcmp.eq.s32.totalorder %v387, 3
        %vm516 = vcmp.eq.s32.totalorder %v388, 3
        %vm517 = vcmp.eq.s32.totalorder %v389, 3
        %vm518 = vcmp.eq.s32.totalorder %v390, 3
        %vm519 = vcmp.eq.s32.totalorder %v391, 3
        %vm520 = vcmp.eq.s32.totalorder %v392, 3
        %vm521 = vcmp.eq.s32.totalorder %v393, 3
        %vm522 = vcmp.eq.s32.totalorder %v394, 3
        %vm523 = vcmp.eq.s32.totalorder %v395, 3
        %vm524 = vcmp.eq.s32.totalorder %v396, 3
        %vm525 = vcmp.eq.s32.totalorder %v397, 3
        %vm526 = vcmp.eq.s32.totalorder %v398, 3
        %vm527 = vcmp.eq.s32.totalorder %v399, 3
        %vm528 = vcmp.eq.s32.totalorder %v400, 3
        %s529 = sadd.s32 %s451, 3
        %s530 = smul.u32 %s529, 128
        %s531 = sadd.s32 %s530, %s456
        %s532 = sld [smem:[#allocation2 + %s531]]
        %v533 = vstv %s532
        %v534 = vsel %vm513, %v533, %v497
        %v535 = vsel %vm514, %v533, %v498
        %v536 = vsel %vm515, %v533, %v499
        %v537 = vsel %vm516, %v533, %v500
        %v538 = vsel %vm517, %v533, %v501
        %v539 = vsel %vm518, %v533, %v502
        %v540 = vsel %vm519, %v533, %v503
        %v541 = vsel %vm520, %v533, %v504
        %v542 = vsel %vm521, %v533, %v505
        %v543 = vsel %vm522, %v533, %v506
        %v544 = vsel %vm523, %v533, %v507
        %v545 = vsel %vm524, %v533, %v508
        %v546 = vsel %vm525, %v533, %v509
        %v547 = vsel %vm526, %v533, %v510
        %v548 = vsel %vm527, %v533, %v511
        %v549 = vsel %vm528, %v533, %v512
        %v550 = vld [vmem:[%s343] sm:$0x1]
        %v551 = vld [vmem:[%s352] sm:$0xff]
        %v552 = vld [vmem:[%s352 + $0x8] sm:$0xff]
        %v553 = vld [vmem:[%s352 + $0x10] sm:$0xff]
        %v554 = vld [vmem:[%s352 + $0x18] sm:$0xff]
        %v555 = vld [vmem:[%s352 + $0x20] sm:$0xff]
        %v556 = vld [vmem:[%s352 + $0x28] sm:$0xff]
        %v557 = vld [vmem:[%s352 + $0x30] sm:$0xff]
        %v558 = vld [vmem:[%s352 + $0x38] sm:$0xff]
        %v559 = vld [vmem:[%s352 + $0x40] sm:$0xff]
        %v560 = vld [vmem:[%s352 + $0x48] sm:$0xff]
        %v561 = vld [vmem:[%s352 + $0x50] sm:$0xff]
        %v562 = vld [vmem:[%s352 + $0x58] sm:$0xff]
        %v563 = vld [vmem:[%s352 + $0x60] sm:$0xff]
        %v564 = vld [vmem:[%s352 + $0x68] sm:$0xff]
        %v565 = vld [vmem:[%s352 + $0x70] sm:$0xff]
        %v566 = vld [vmem:[%s352 + $0x78] sm:$0xff]
        %v568 = vperm.slane %v550, 0
        %571 = vset.pattern.permute.xlu0 0
        %572 = vperm.xlu0 %571, %v551
        %v573 = vpop.permute.xlu0 %572
        %576 = vset.pattern.permute.xlu0 0
        %577 = vperm.xlu0 %576, %v552
        %v578 = vpop.permute.xlu0 %577
        %581 = vset.pattern.permute.xlu0 0
        %582 = vperm.xlu0 %581, %v553
        %v583 = vpop.permute.xlu0 %582
        %586 = vset.pattern.permute.xlu0 0
        %587 = vperm.xlu0 %586, %v554
        %v588 = vpop.permute.xlu0 %587
        %591 = vset.pattern.permute.xlu0 0
        %592 = vperm.xlu0 %591, %v555
        %v593 = vpop.permute.xlu0 %592
        %596 = vset.pattern.permute.xlu0 0
        %597 = vperm.xlu0 %596, %v556
        %v598 = vpop.permute.xlu0 %597
        %601 = vset.pattern.permute.xlu0 0
        %602 = vperm.xlu0 %601, %v557
        %v603 = vpop.permute.xlu0 %602
        %606 = vset.pattern.permute.xlu0 0
        %607 = vperm.xlu0 %606, %v558
        %v608 = vpop.permute.xlu0 %607
        %611 = vset.pattern.permute.xlu0 0
        %612 = vperm.xlu0 %611, %v559
        %v613 = vpop.permute.xlu0 %612
        %616 = vset.pattern.permute.xlu0 0
        %617 = vperm.xlu0 %616, %v560
        %v618 = vpop.permute.xlu0 %617
        %621 = vset.pattern.permute.xlu0 0
        %622 = vperm.xlu0 %621, %v561
        %v623 = vpop.permute.xlu0 %622
        %626 = vset.pattern.permute.xlu0 0
        %627 = vperm.xlu0 %626, %v562
        %v628 = vpop.permute.xlu0 %627
        %631 = vset.pattern.permute.xlu0 0
        %632 = vperm.xlu0 %631, %v563
        %v633 = vpop.permute.xlu0 %632
        %636 = vset.pattern.permute.xlu0 0
        %637 = vperm.xlu0 %636, %v564
        %v638 = vpop.permute.xlu0 %637
        %641 = vset.pattern.permute.xlu0 0
        %642 = vperm.xlu0 %641, %v565
        %v643 = vpop.permute.xlu0 %642
        %646 = vset.pattern.permute.xlu0 0
        %647 = vperm.xlu0 %646, %v566
        %v648 = vpop.permute.xlu0 %647
        %v650 = vadd.f32 %v568, %v573
        %v651 = vadd.f32 %v568, %v578
        %v652 = vadd.f32 %v568, %v583
        %v653 = vadd.f32 %v568, %v588
        %v654 = vadd.f32 %v568, %v593
        %v655 = vadd.f32 %v568, %v598
        %v656 = vadd.f32 %v568, %v603
        %v657 = vadd.f32 %v568, %v608
        %v658 = vadd.f32 %v568, %v613
        %v659 = vadd.f32 %v568, %v618
        %v660 = vadd.f32 %v568, %v623
        %v661 = vadd.f32 %v568, %v628
        %v662 = vadd.f32 %v568, %v633
        %v663 = vadd.f32 %v568, %v638
        %v664 = vadd.f32 %v568, %v643
        %v665 = vadd.f32 %v568, %v648
        %v666 = vadd.f32 %v650, %v534
        %v667 = vadd.f32 %v651, %v535
        %v668 = vadd.f32 %v652, %v536
        %v669 = vadd.f32 %v653, %v537
        %v670 = vadd.f32 %v654, %v538
        %v671 = vadd.f32 %v655, %v539
        %v672 = vadd.f32 %v656, %v540
        %v673 = vadd.f32 %v657, %v541
        %v674 = vadd.f32 %v658, %v542
        %v675 = vadd.f32 %v659, %v543
        %v676 = vadd.f32 %v660, %v544
        %v677 = vadd.f32 %v661, %v545
        %v678 = vadd.f32 %v662, %v546
        %v679 = vadd.f32 %v663, %v547
        %v680 = vadd.f32 %v664, %v548
        %v681 = vadd.f32 %v665, %v549
        %vm682 = vcmp.gt.f32.partialorder %v666, 0.0
        %vm683 = vcmp.gt.f32.partialorder %v667, 0.0
        %vm684 = vcmp.gt.f32.partialorder %v668, 0.0
        %vm685 = vcmp.gt.f32.partialorder %v669, 0.0
        %vm686 = vcmp.gt.f32.partialorder %v670, 0.0
        %vm687 = vcmp.gt.f32.partialorder %v671, 0.0
        %vm688 = vcmp.gt.f32.partialorder %v672, 0.0
        %vm689 = vcmp.gt.f32.partialorder %v673, 0.0
        %vm690 = vcmp.gt.f32.partialorder %v674, 0.0
        %vm691 = vcmp.gt.f32.partialorder %v675, 0.0
        %vm692 = vcmp.gt.f32.partialorder %v676, 0.0
        %vm693 = vcmp.gt.f32.partialorder %v677, 0.0
        %vm694 = vcmp.gt.f32.partialorder %v678, 0.0
        %vm695 = vcmp.gt.f32.partialorder %v679, 0.0
        %vm696 = vcmp.gt.f32.partialorder %v680, 0.0
        %vm697 = vcmp.gt.f32.partialorder %v681, 0.0
        %v698 = vmul.f32 %v666, 0.2
        %v699 = vmul.f32 %v667, 0.2
        %v700 = vmul.f32 %v668, 0.2
        %v701 = vmul.f32 %v669, 0.2
        %v702 = vmul.f32 %v670, 0.2
        %v703 = vmul.f32 %v671, 0.2
        %v704 = vmul.f32 %v672, 0.2
        %v705 = vmul.f32 %v673, 0.2
        %v706 = vmul.f32 %v674, 0.2
        %v707 = vmul.f32 %v675, 0.2
        %v708 = vmul.f32 %v676, 0.2
        %v709 = vmul.f32 %v677, 0.2
        %v710 = vmul.f32 %v678, 0.2
        %v711 = vmul.f32 %v679, 0.2
        %v712 = vmul.f32 %v680, 0.2
        %v713 = vmul.f32 %v681, 0.2
        %v714 = vsel %vm682, %v666, %v698
        %v715 = vsel %vm683, %v667, %v699
        %v716 = vsel %vm684, %v668, %v700
        %v717 = vsel %vm685, %v669, %v701
        %v718 = vsel %vm686, %v670, %v702
        %v719 = vsel %vm687, %v671, %v703
        %v720 = vsel %vm688, %v672, %v704
        %v721 = vsel %vm689, %v673, %v705
        %v722 = vsel %vm690, %v674, %v706
        %v723 = vsel %vm691, %v675, %v707
        %v724 = vsel %vm692, %v676, %v708
        %v725 = vsel %vm693, %v677, %v709
        %v726 = vsel %vm694, %v678, %v710
        %v727 = vsel %vm695, %v679, %v711
        %v728 = vsel %vm696, %v680, %v712
        %v729 = vsel %vm697, %v681, %v713
        %730 = vmax.xlane.f32.xlu0 %v714
        %v731 = vpop.xlane.xlu0 %730
        %732 = vmax.xlane.f32.xlu0 %v715
        %v733 = vpop.xlane.xlu0 %732
        %734 = vmax.xlane.f32.xlu0 %v716
        %v735 = vpop.xlane.xlu0 %734
        %736 = vmax.xlane.f32.xlu0 %v717
        %v737 = vpop.xlane.xlu0 %736
        %738 = vmax.xlane.f32.xlu0 %v718
        %v739 = vpop.xlane.xlu0 %738
        %740 = vmax.xlane.f32.xlu0 %v719
        %v741 = vpop.xlane.xlu0 %740
        %742 = vmax.xlane.f32.xlu0 %v720
        %v743 = vpop.xlane.xlu0 %742
        %744 = vmax.xlane.f32.xlu0 %v721
        %v745 = vpop.xlane.xlu0 %744
        %746 = vmax.xlane.f32.xlu0 %v722
        %v747 = vpop.xlane.xlu0 %746
        %748 = vmax.xlane.f32.xlu0 %v723
        %v749 = vpop.xlane.xlu0 %748
        %750 = vmax.xlane.f32.xlu0 %v724
        %v751 = vpop.xlane.xlu0 %750
        %752 = vmax.xlane.f32.xlu0 %v725
        %v753 = vpop.xlane.xlu0 %752
        %754 = vmax.xlane.f32.xlu0 %v726
        %v755 = vpop.xlane.xlu0 %754
        %756 = vmax.xlane.f32.xlu0 %v727
        %v757 = vpop.xlane.xlu0 %756
        %758 = vmax.xlane.f32.xlu0 %v728
        %v759 = vpop.xlane.xlu0 %758
        %760 = vmax.xlane.f32.xlu0 %v729
        %v761 = vpop.xlane.xlu0 %760
        %v762 = vsub.f32 %v714, %v731
        %v763 = vsub.f32 %v715, %v733
        %v764 = vsub.f32 %v716, %v735
        %v765 = vsub.f32 %v717, %v737
        %v766 = vsub.f32 %v718, %v739
        %v767 = vsub.f32 %v719, %v741
        %v768 = vsub.f32 %v720, %v743
        %v769 = vsub.f32 %v721, %v745
        %v770 = vsub.f32 %v722, %v747
        %v771 = vsub.f32 %v723, %v749
        %v772 = vsub.f32 %v724, %v751
        %v773 = vsub.f32 %v725, %v753
        %v774 = vsub.f32 %v726, %v755
        %v775 = vsub.f32 %v727, %v757
        %v776 = vsub.f32 %v728, %v759
        %v777 = vsub.f32 %v729, %v761
        %v778 = vmul.f32 %v762, 1.442695
        %v779 = vpow.pop %v778
        %v780 = vmul.f32 %v763, 1.442695
        %v781 = vpow.pop %v780
        %v782 = vmul.f32 %v764, 1.442695
        %v783 = vpow.pop %v782
        %v784 = vmul.f32 %v765, 1.442695
        %v785 = vpow.pop %v784
        %v786 = vmul.f32 %v766, 1.442695
        %v787 = vpow.pop %v786
        %v788 = vmul.f32 %v767, 1.442695
        %v789 = vpow.pop %v788
        %v790 = vmul.f32 %v768, 1.442695
        %v791 = vpow.pop %v790
        %v792 = vmul.f32 %v769, 1.442695
        %v793 = vpow.pop %v792
        %v794 = vmul.f32 %v770, 1.442695
        %v795 = vpow.pop %v794
        %v796 = vmul.f32 %v771, 1.442695
        %v797 = vpow.pop %v796
        %v798 = vmul.f32 %v772, 1.442695
        %v799 = vpow.pop %v798
        %v800 = vmul.f32 %v773, 1.442695
        %v801 = vpow.pop %v800
        %v802 = vmul.f32 %v774, 1.442695
        %v803 = vpow.pop %v802
        %v804 = vmul.f32 %v775, 1.442695
        %v805 = vpow.pop %v804
        %v806 = vmul.f32 %v776, 1.442695
        %v807 = vpow.pop %v806
        %v808 = vmul.f32 %v777, 1.442695
        %v809 = vpow.pop %v808
        %810 = vadd.xlane.f32.xlu0 %v779
        %v811 = vpop.xlane.xlu0 %810
        %812 = vadd.xlane.f32.xlu0 %v781
        %v813 = vpop.xlane.xlu0 %812
        %814 = vadd.xlane.f32.xlu0 %v783
        %v815 = vpop.xlane.xlu0 %814
        %816 = vadd.xlane.f32.xlu0 %v785
        %v817 = vpop.xlane.xlu0 %816
        %818 = vadd.xlane.f32.xlu0 %v787
        %v819 = vpop.xlane.xlu0 %818
        %820 = vadd.xlane.f32.xlu0 %v789
        %v821 = vpop.xlane.xlu0 %820
        %822 = vadd.xlane.f32.xlu0 %v791
        %v823 = vpop.xlane.xlu0 %822
        %824 = vadd.xlane.f32.xlu0 %v793
        %v825 = vpop.xlane.xlu0 %824
        %826 = vadd.xlane.f32.xlu0 %v795
        %v827 = vpop.xlane.xlu0 %826
        %828 = vadd.xlane.f32.xlu0 %v797
        %v829 = vpop.xlane.xlu0 %828
        %830 = vadd.xlane.f32.xlu0 %v799
        %v831 = vpop.xlane.xlu0 %830
        %832 = vadd.xlane.f32.xlu0 %v801
        %v833 = vpop.xlane.xlu0 %832
        %834 = vadd.xlane.f32.xlu0 %v803
        %v835 = vpop.xlane.xlu0 %834
        %836 = vadd.xlane.f32.xlu0 %v805
        %v837 = vpop.xlane.xlu0 %836
        %838 = vadd.xlane.f32.xlu0 %v807
        %v839 = vpop.xlane.xlu0 %838
        %840 = vadd.xlane.f32.xlu0 %v809
        %v841 = vpop.xlane.xlu0 %840
        %v842 = vrcp.pop %v811
        %v843 = vrcp.pop %v813
        %v844 = vrcp.pop %v815
        %v845 = vrcp.pop %v817
        %v846 = vrcp.pop %v819
        %v847 = vrcp.pop %v821
        %v848 = vrcp.pop %v823
        %v849 = vrcp.pop %v825
        %v850 = vrcp.pop %v827
        %v851 = vrcp.pop %v829
        %v852 = vrcp.pop %v831
        %v853 = vrcp.pop %v833
        %v854 = vrcp.pop %v835
        %v855 = vrcp.pop %v837
        %v856 = vrcp.pop %v839
        %v857 = vrcp.pop %v841
        %v858 = vmul.f32 %v779, %v842
        %v859 = vmul.f32 %v781, %v843
        %v860 = vmul.f32 %v783, %v844
        %v861 = vmul.f32 %v785, %v845
        %v862 = vmul.f32 %v787, %v846
        %v863 = vmul.f32 %v789, %v847
        %v864 = vmul.f32 %v791, %v848
        %v865 = vmul.f32 %v793, %v849
        %v866 = vmul.f32 %v795, %v850
        %v867 = vmul.f32 %v797, %v851
        %v868 = vmul.f32 %v799, %v852
        %v869 = vmul.f32 %v801, %v853
        %v870 = vmul.f32 %v803, %v854
        %v871 = vmul.f32 %v805, %v855
        %v872 = vmul.f32 %v807, %v856
        %v873 = vmul.f32 %v809, %v857
        %v874 = vpack.c.bf16 %v858, %v858
        %v875 = vpack.c.bf16 %v859, %v859
        %v876 = vpack.c.bf16 %v860, %v860
        %v877 = vpack.c.bf16 %v861, %v861
        %v878 = vpack.c.bf16 %v862, %v862
        %v879 = vpack.c.bf16 %v863, %v863
        %v880 = vpack.c.bf16 %v864, %v864
        %v881 = vpack.c.bf16 %v865, %v865
        %v882 = vpack.c.bf16 %v866, %v866
        %v883 = vpack.c.bf16 %v867, %v867
        %v884 = vpack.c.bf16 %v868, %v868
        %v885 = vpack.c.bf16 %v869, %v869
        %v886 = vpack.c.bf16 %v870, %v870
        %v887 = vpack.c.bf16 %v871, %v871
        %v888 = vpack.c.bf16 %v872, %v872
        %v889 = vpack.c.bf16 %v873, %v873
        %v890 = vld [vmem:[%s358] sm:$0xf]
        %v891 = vld [vmem:[%s358 + $0x4] sm:$0xf]
        %v892 = vld [vmem:[%s358 + $0x8] sm:$0xf]
        %v893 = vld [vmem:[%s358 + $0xc] sm:$0xf]
        %v894 = vld [vmem:[%s358 + $0x10] sm:$0xf]
        %v895 = vld [vmem:[%s358 + $0x14] sm:$0xf]
        %v896 = vld [vmem:[%s358 + $0x18] sm:$0xf]
        %v897 = vld [vmem:[%s358 + $0x1c] sm:$0xf]
        %v898 = vld [vmem:[%s358 + $0x20] sm:$0xf]
        %v899 = vld [vmem:[%s358 + $0x24] sm:$0xf]
        %v900 = vld [vmem:[%s358 + $0x28] sm:$0xf]
        %v901 = vld [vmem:[%s358 + $0x2c] sm:$0xf]
        %v902 = vld [vmem:[%s358 + $0x30] sm:$0xf]
        %v903 = vld [vmem:[%s358 + $0x34] sm:$0xf]
        %v904 = vld [vmem:[%s358 + $0x38] sm:$0xf]
        %v905 = vld [vmem:[%s358 + $0x3c] sm:$0xf]
        %v922 = vunpack.c.l.b16 %v874
        %v923 = vunpack.c.l.b16 %v875
        %v924 = vunpack.c.l.b16 %v876
        %v925 = vunpack.c.l.b16 %v877
        %v926 = vunpack.c.l.b16 %v878
        %v927 = vunpack.c.l.b16 %v879
        %v928 = vunpack.c.l.b16 %v880
        %v929 = vunpack.c.l.b16 %v881
        %v930 = vunpack.c.l.b16 %v882
        %v931 = vunpack.c.l.b16 %v883
        %v932 = vunpack.c.l.b16 %v884
        %v933 = vunpack.c.l.b16 %v885
        %v934 = vunpack.c.l.b16 %v886
        %v935 = vunpack.c.l.b16 %v887
        %v936 = vunpack.c.l.b16 %v888
        %v937 = vunpack.c.l.b16 %v889
        %v938 = vpack.c.b16 %v923, %v922
        %v939 = vpack.c.b16 %v925, %v924
        %v940 = vpack.c.b16 %v927, %v926
        %v941 = vpack.c.b16 %v929, %v928
        %v942 = vpack.c.b16 %v931, %v930
        %v943 = vpack.c.b16 %v933, %v932
        %v944 = vpack.c.b16 %v935, %v934
        %v945 = vpack.c.b16 %v937, %v936
        %v970 = vunpack.c.l.b16 %v890
        %v971 = vunpack.c.l.b16 %v891
        %v972 = vunpack.c.l.b16 %v892
        %v973 = vunpack.c.l.b16 %v893
        %v974 = vunpack.c.l.b16 %v894
        %v975 = vunpack.c.l.b16 %v895
        %v976 = vunpack.c.l.b16 %v896
        %v977 = vunpack.c.l.b16 %v897
        %v978 = vunpack.c.l.b16 %v898
        %v979 = vunpack.c.l.b16 %v899
        %v980 = vunpack.c.l.b16 %v900
        %v981 = vunpack.c.l.b16 %v901
        %v982 = vunpack.c.l.b16 %v902
        %v983 = vunpack.c.l.b16 %v903
        %v984 = vunpack.c.l.b16 %v904
        %v985 = vunpack.c.l.b16 %v905
        %v986 = vpack.c.b16 %v971, %v970
        %v987 = vpack.c.b16 %v973, %v972
        %v988 = vpack.c.b16 %v975, %v974
        %v989 = vpack.c.b16 %v977, %v976
        %v990 = vpack.c.b16 %v979, %v978
        %v991 = vpack.c.b16 %v981, %v980
        %v992 = vpack.c.b16 %v983, %v982
        %v993 = vpack.c.b16 %v985, %v984
        %1002 = vmatpush.bf16.msra.mxu0 %v993
        %1003 = vmatpush.bf16.msra.mxu0 %v992
        %1004 = vmatpush.bf16.msra.mxu0 %v991
        %1005 = vmatpush.bf16.msra.mxu0 %v990
        %1006 = vmatpush.bf16.msra.mxu0 %v989
        %1007 = vmatpush.bf16.msra.mxu0 %v988
        %1008 = vmatpush.bf16.msra.mxu0 %v987
        %1009 = vmatpush.bf16.msra.mxu0 %v986
        %1010 = vmatmul.bf16.gmra.mxu0 %v938
        %v1011 = vpop.f32.mrf.mxu0
        %v1012 = vadd.f32 0.0, %v1011
        %v1013 = vpop.f32.mrf.mxu0
        %v1014 = vadd.f32 0.0, %v1013
        %1015 = vmatmul.bf16.gmra.mxu0 %v939
        %v1016 = vpop.f32.mrf.mxu0
        %v1017 = vadd.f32 0.0, %v1016
        %v1018 = vpop.f32.mrf.mxu0
        %v1019 = vadd.f32 0.0, %v1018
        %1020 = vmatmul.bf16.gmra.mxu0 %v940
        %v1021 = vpop.f32.mrf.mxu0
        %v1022 = vadd.f32 0.0, %v1021
        %v1023 = vpop.f32.mrf.mxu0
        %v1024 = vadd.f32 0.0, %v1023
        %1025 = vmatmul.bf16.gmra.mxu0 %v941
        %v1026 = vpop.f32.mrf.mxu0
        %v1027 = vadd.f32 0.0, %v1026
        %v1028 = vpop.f32.mrf.mxu0
        %v1029 = vadd.f32 0.0, %v1028
        %1030 = vmatmul.bf16.gmra.mxu0 %v942
        %v1031 = vpop.f32.mrf.mxu0
        %v1032 = vadd.f32 0.0, %v1031
        %v1033 = vpop.f32.mrf.mxu0
        %v1034 = vadd.f32 0.0, %v1033
        %1035 = vmatmul.bf16.gmra.mxu0 %v943
        %v1036 = vpop.f32.mrf.mxu0
        %v1037 = vadd.f32 0.0, %v1036
        %v1038 = vpop.f32.mrf.mxu0
        %v1039 = vadd.f32 0.0, %v1038
        %1040 = vmatmul.bf16.gmra.mxu0 %v944
        %v1041 = vpop.f32.mrf.mxu0
        %v1042 = vadd.f32 0.0, %v1041
        %v1043 = vpop.f32.mrf.mxu0
        %v1044 = vadd.f32 0.0, %v1043
        %1045 = vmatmul.bf16.gmra.mxu0 %v945
        %v1046 = vpop.f32.mrf.mxu0
        %v1047 = vadd.f32 0.0, %v1046
        %v1048 = vpop.f32.mrf.mxu0
        %v1049 = vadd.f32 0.0, %v1048
        %1050 = vdwg.mxu0
        %1051 = vst [vmem:[%s373] sm:$0xf] %v874
        %1052 = vst [vmem:[%s373 + $0x4] sm:$0xf] %v875
        %1053 = vst [vmem:[%s373 + $0x8] sm:$0xf] %v876
        %1054 = vst [vmem:[%s373 + $0xc] sm:$0xf] %v877
        %1055 = vst [vmem:[%s373 + $0x10] sm:$0xf] %v878
        %1056 = vst [vmem:[%s373 + $0x14] sm:$0xf] %v879
        %1057 = vst [vmem:[%s373 + $0x18] sm:$0xf] %v880
        %1058 = vst [vmem:[%s373 + $0x1c] sm:$0xf] %v881
        %1059 = vst [vmem:[%s373 + $0x20] sm:$0xf] %v882
        %1060 = vst [vmem:[%s373 + $0x24] sm:$0xf] %v883
        %1061 = vst [vmem:[%s373 + $0x28] sm:$0xf] %v884
        %1062 = vst [vmem:[%s373 + $0x2c] sm:$0xf] %v885
        %1063 = vst [vmem:[%s373 + $0x30] sm:$0xf] %v886
        %1064 = vst [vmem:[%s373 + $0x34] sm:$0xf] %v887
        %1065 = vst [vmem:[%s373 + $0x38] sm:$0xf] %v888
        %1066 = vst [vmem:[%s373 + $0x3c] sm:$0xf] %v889
        %vm1067 = vcmask 261120
        %1068 = vst.msk [vmem:[%s383] sm:$0xff] %vm1067, %v1012
        %1069 = vst.msk [vmem:[%s383 + $0x8] sm:$0xff] %vm1067, %v1014
        %1070 = vst.msk [vmem:[%s383 + $0x10] sm:$0xff] %vm1067, %v1017
        %1071 = vst.msk [vmem:[%s383 + $0x18] sm:$0xff] %vm1067, %v1019
        %1072 = vst.msk [vmem:[%s383 + $0x20] sm:$0xff] %vm1067, %v1022
        %1073 = vst.msk [vmem:[%s383 + $0x28] sm:$0xff] %vm1067, %v1024
        %1074 = vst.msk [vmem:[%s383 + $0x30] sm:$0xff] %vm1067, %v1027
        %1075 = vst.msk [vmem:[%s383 + $0x38] sm:$0xff] %vm1067, %v1029
        %1076 = vst.msk [vmem:[%s383 + $0x40] sm:$0xff] %vm1067, %v1032
        %1077 = vst.msk [vmem:[%s383 + $0x48] sm:$0xff] %vm1067, %v1034
        %1078 = vst.msk [vmem:[%s383 + $0x50] sm:$0xff] %vm1067, %v1037
        %1079 = vst.msk [vmem:[%s383 + $0x58] sm:$0xff] %vm1067, %v1039
        %1080 = vst.msk [vmem:[%s383 + $0x60] sm:$0xff] %vm1067, %v1042
        %1081 = vst.msk [vmem:[%s383 + $0x68] sm:$0xff] %vm1067, %v1044
        %1082 = vst.msk [vmem:[%s383 + $0x70] sm:$0xff] %vm1067, %v1047
        %1083 = vst.msk [vmem:[%s383 + $0x78] sm:$0xff] %vm1067, %v1049
        %s1084 = smul.u32 16, %s23
        %p1085 = scmp.lt.s32.totalorder %s24, 3
        %s1086 = scalar_select %p1085, %s24, 3
        %p1087 = scmp.lt.s32.totalorder %s1084, 15
        %s1088 = scalar_select %p1087, %s1084, 15
        %s1089 = smul.addr %s1086, 16
        %s1090 = sadd.s32 %s1088, %s1089
        %s1091 = smul.addr %s1090, 4
        %s1092 = scalar_lea.vmem %s5, %s1091
        %s1093 = smul.u32 16, %s23
        %p1094 = scmp.lt.s32.totalorder %s24, 3
        %s1095 = scalar_select %p1094, %s24, 3
        %p1096 = scmp.lt.s32.totalorder %s1093, 15
        %s1097 = scalar_select %p1096, %s1093, 15
        %s1098 = smul.addr %s1095, 16
        %s1099 = sadd.s32 %s1097, %s1098
        %s1100 = smul.addr %s1099, 8
        %s1101 = scalar_lea.vmem %s6, %s1100
        // Predicated region
        $region45: #{changed_gat_conv_forward.1} parent=39 // pred_check
          %p1102 = pneg %p178
        $region46: #{changed_gat_conv_forward.1} parent=39 // pred_check_branch
          %1104 = sbr.rel (%p1102) target = $region48
        $region47: #{changed_gat_conv_forward.1} parent=39 // pred_region
          %s1105 = smul.u32 16, %s23
        $region48: #{changed_gat_conv_forward.1} parent=39 // pred_fallthru
          _
        // Predicated region
        $region49: #{changed_gat_conv_forward.1} parent=39 // pred_check
          %p1106 = pneg %p206
        $region50: #{changed_gat_conv_forward.1} parent=39 // pred_check_branch
          %1108 = sbr.rel (%p1106) target = $region52
        $region51: #{changed_gat_conv_forward.1} parent=39 // pred_region
          %s1109 = smul.u32 16, %s23
        $region52: #{changed_gat_conv_forward.1} parent=39 // pred_fallthru
          _
      $region40: #{changed_gat_conv_forward.1} parent=5 // pred_fallthru
        _
      %p1110 = scmp.le.s32.totalorder 2, %s14
      // Predicated region
      $region53: #{changed_gat_conv_forward.1} parent=5 // pred_check
        %p1111 = pneg %p1110
      $region54: #{changed_gat_conv_forward.1} parent=5 // pred_check_branch
        %1113 = sbr.rel (%p1111) target = $region56
      $region55: #{changed_gat_conv_forward.1} parent=5 // pred_region
        %s1114 = ssub.s32 %s14, 2
        // Predicated region
        $region57: #{changed_gat_conv_forward.1} parent=55 // pred_check
          %p1115 = pneg %p184
        $region58: #{changed_gat_conv_forward.1} parent=55 // pred_check_branch
          %1117 = sbr.rel (%p1115) target = $region60
        $region59: #{changed_gat_conv_forward.1} parent=55 // pred_region
          %s1118 = smul.u32 16, %s25
          %p1119 = scmp.lt.s32.totalorder %s26, 3
          %s1120 = scalar_select %p1119, %s26, 3
          %p1121 = scmp.lt.s32.totalorder %s1118, 15
          %s1122 = scalar_select %p1121, %s1118, 15
          %s1123 = smul.addr %s1120, 16
          %s1124 = sadd.s32 %s1122, %s1123
          %s1125 = smul.addr %s1124, 4
          %s1126 = scalar_lea.vmem %s5, %s1125
        $region60: #{changed_gat_conv_forward.1} parent=55 // pred_fallthru
          _
        // Predicated region
        $region61: #{changed_gat_conv_forward.1} parent=55 // pred_check
          %p1127 = pneg %p212
        $region62: #{changed_gat_conv_forward.1} parent=55 // pred_check_branch
          %1129 = sbr.rel (%p1127) target = $region64
        $region63: #{changed_gat_conv_forward.1} parent=55 // pred_region
          %s1130 = smul.u32 16, %s25
          %p1131 = scmp.lt.s32.totalorder %s26, 3
          %s1132 = scalar_select %p1131, %s26, 3
          %p1133 = scmp.lt.s32.totalorder %s1130, 15
          %s1134 = scalar_select %p1133, %s1130, 15
          %s1135 = smul.addr %s1132, 16
          %s1136 = sadd.s32 %s1134, %s1135
          %s1137 = smul.addr %s1136, 8
          %s1138 = scalar_lea.vmem %s6, %s1137
        $region64: #{changed_gat_conv_forward.1} parent=55 // pred_fallthru
          _
      $region56: #{changed_gat_conv_forward.1} parent=5 // pred_fallthru
        _
    $region6: #{changed_gat_conv_forward.1} parent=1 // loop_footer
      %s18 = sadd.s32 1, %s14
    $region7: #{changed_gat_conv_forward.1} parent=1 // loop_footer_branch
      %13 = sbr.rel target = $region3
    $region8: #{changed_gat_conv_forward.1} parent=1 // loop_exit
      _
    %1139 = vsyncpa [#allocation3], 1
    %s1140 = scalar_lea.sflag [#allocation3], 1
    %1141 = vsyncpa %s1140, 1

</llo_original>
